<compile_context>
chip_gen: v6e
topology: v6e:2x2x1
jax: 0.10.0
libtpu: 0.0.40
codegen_flags: <defaults>
</compile_context>

<pallas_src>
import jax
import jax.numpy as jnp
from jax.experimental import pallas as pl
from jax.experimental.pallas import tpu as pltpu


def _round_up(x, m):
    return ((x + m - 1) // m) * m


def _vmem_limit_bytes():
    """Scoped-VMEM limit to request from Mosaic, per-chip aware (64 MiB v7x)."""
    try:
        cap = pltpu.get_tpu_info().vmem_capacity_bytes
    except Exception:
        cap = 64 * 1024 * 1024          # assume the smallest (v7x) if unknown
    return int(min(100 * 1024 * 1024, (cap * 3) // 4))


def _largest_divisor_leq(h, cap, mult):
    best = None
    d = mult
    cap = min(cap, h)
    while d <= cap:
        if h % d == 0:
            best = d
        d += mult
    return best


def _pick_th(h, cap):
    """Largest divisor of h <= cap, preferring multiples of 256 (v6e/v7x MXU),
    then 128 (v5e), then 8, then anything (never returns a non-divisor)."""
    cap = max(1, cap)
    for mult in (256, 128, 8, 1):
        d = _largest_divisor_leq(h, cap, mult)
        if d is not None:
            return d
    return h


def _mlp_kernel_resident(x_ref, wfc_ref, wproj_ref, o_ref):
    # x_ref: (tm, C) token tile; wfc_ref: (C, H); wproj_ref: (H, C); o_ref: (tm, C).
    # Weight block indices are constant -> DMA'd once, stay VMEM-resident.
    h = jnp.dot(x_ref[...], wfc_ref[...], preferred_element_type=jnp.float32)
    h = jnp.maximum(h, 0.0)
    h = h * h                                   # relu(.)**2 ; (tm, H) f32 VMEM temp
    o_ref[...] = jnp.dot(h.astype(wproj_ref.dtype), wproj_ref[...],
                         preferred_element_type=jnp.float32).astype(o_ref.dtype)


def _make_mlp_kernel_tiled(nk):
    """Hidden-axis-tiled kernel; nk = number of k (reduction) steps, static."""

    def kernel(x_ref, wfc_ref, wproj_ref, o_ref, acc_ref):
        # x_ref: (tm, C) resident across k; wfc_ref: (C, th); wproj_ref: (th, C)
        # o_ref: (tm, C) revisited across k; acc_ref: (tm, C) f32 scratch.
        k = pl.program_id(1)
        h = jnp.dot(x_ref[...], wfc_ref[...], preferred_element_type=jnp.float32)
        h = jnp.maximum(h, 0.0)
        h = h * h
        part = jnp.dot(h.astype(wproj_ref.dtype), wproj_ref[...],
                       preferred_element_type=jnp.float32)

        @pl.when(k == 0)
        def _():                      # first step: plain store, no zero-fill / RMW
            acc_ref[...] = part

        @pl.when(jnp.logical_and(k > 0, k < nk - 1))
        def _():
            acc_ref[...] = acc_ref[...] + part

        @pl.when(k == nk - 1)
        def _():                      # fold the final add into the output store
            o_ref[...] = (acc_ref[...] + part).astype(o_ref.dtype)

    return kernel


def mlp_forward(x, w_fc, w_proj, *, tm=512, th=None,
                compute_dtype=jnp.bfloat16, vmem_limit_bytes=None,
                pre_transposed=False):
    """Fused relu-squared MLP forward: y = relu(x @ Wfc^T)^2 @ Wproj^T.

    x:      [B, T, C]
    w_fc:   [4C, C] (PyTorch (out, in)) or [C, 4C] if pre_transposed=True
    w_proj: [C, 4C] (PyTorch (out, in)) or [4C, C] if pre_transposed=True
    compute_dtype: MXU operand dtype (bf16 default). Accumulation is always
                   f32; the output keeps x.dtype.
    th: optional max hidden-tile size. None (default) keeps the full weights
        VMEM-resident when they fit the budget, else auto-picks a divisor of 4C.
    """
    B, T, C = x.shape
    if pre_transposed:
        wfc_t, wproj_t = w_fc, w_proj
        C_in, H = wfc_t.shape
        assert C_in == C and wproj_t.shape == (H, C)
    else:
        H, C_in = w_fc.shape
        assert C_in == C and w_proj.shape == (C, H)
        wfc_t, wproj_t = w_fc.T, w_proj.T        # (C, H), (H, C)
    M = B * T

    compute_dtype = jnp.dtype(compute_dtype if compute_dtype is not None else x.dtype)
    out_dtype = x.dtype
    in_b = compute_dtype.itemsize
    out_b = jnp.dtype(out_dtype).itemsize

    x2d = x.reshape(M, C).astype(compute_dtype)
    wfc_t = wfc_t.astype(compute_dtype)
    wproj_t = wproj_t.astype(compute_dtype)

    vmem_limit = (vmem_limit_bytes if vmem_limit_bytes is not None
                  else _vmem_limit_bytes())
    tile_budget = int(vmem_limit * 0.85)

    # ---- token tile: large (512 default) to amortize weight streaming; split
    # small M into >=2 tiles so the "parallel" axis covers both v7x cores; keep
    # the sublane dim a multiple of 8 (f32) / 16 (bf16 packing).
    min_tm = 16 if in_b <= 2 else 8
    if M <= min_tm:
        tm = M
    else:
        tm = _round_up(max(min_tm, min(tm, M)), min_tm)
        if pl.cdiv(M, tm) < 2:
            tm = _round_up(pl.cdiv(M, 2), min_tm)

    # ---- VMEM footprint model (double-buffered pipeline tiles + f32 scratch +
    # the f32 hidden intermediate, which is a VMEM temporary, not vregs).
    def resident_fp(tm_):
        return (2 * tm_ * C * in_b               # x tile (double-buffered)
                + 2 * 2 * C * H * in_b           # Wfc + Wproj, fully resident
                + 2 * tm_ * C * out_b            # out tile
                + tm_ * H * (4 + in_b))          # f32 hidden interm. + cast copy

    def tiled_fp(tm_, th_):
        return (2 * tm_ * C * in_b
                + 2 * 2 * C * th_ * in_b         # Wfc/Wproj k-slices
                + 2 * tm_ * C * out_b
                + tm_ * C * 4                    # f32 accumulator scratch
                + tm_ * th_ * (4 + in_b))

    # ---- hidden tile: prefer resident weights (no per-token-tile re-streaming)
    if th is None:
        if resident_fp(tm) <= tile_budget:
            th = H
        else:
            th = _pick_th(H, 512)
    else:
        th = _pick_th(H, th)                     # largest valid divisor <= request

    if th < H:
        while tiled_fp(tm, th) > tile_budget and th > 1:
            nxt = _pick_th(H, th - 1)
            if nxt >= th:
                break
            th = nxt
        while tiled_fp(tm, th) > tile_budget and tm > min_tm:
            tm = max(min_tm, _round_up(tm // 2, min_tm))
    else:
        while resident_fp(tm) > tile_budget and tm > min_tm:
            tm = max(min_tm, _round_up(tm // 2, min_tm))

    ni = pl.cdiv(M, tm)
    nk = H // th

    # Advisory cost model so XLA schedules surrounding ops sensibly.
    weight_stream = (2 * C * H * in_b) * (1 if nk == 1 else ni)
    cost = pl.CostEstimate(flops=4 * M * C * H, transcendentals=0,
                           bytes_accessed=M * C * (in_b + out_b) + weight_stream)

    if nk == 1:
        out2d = pl.pallas_call(
            _mlp_kernel_resident,
            out_shape=jax.ShapeDtypeStruct((M, C), out_dtype),
            grid_spec=pltpu.PrefetchScalarGridSpec(
                num_scalar_prefetch=0,
                grid=(ni,),
                in_specs=[
                    pl.BlockSpec((tm, C), lambda i: (i, 0)),   # token tile
                    pl.BlockSpec((C, H), lambda i: (0, 0)),    # resident Wfc
                    pl.BlockSpec((H, C), lambda i: (0, 0)),    # resident Wproj
                ],
                out_specs=pl.BlockSpec((tm, C), lambda i: (i, 0)),
            ),
            compiler_params=pltpu.CompilerParams(
                dimension_semantics=("parallel",),
                vmem_limit_bytes=vmem_limit,
            ),
            cost_estimate=cost,
        )(x2d, wfc_t, wproj_t)
    else:
        out2d = pl.pallas_call(
            _make_mlp_kernel_tiled(nk),
            out_shape=jax.ShapeDtypeStruct((M, C), out_dtype),
            grid_spec=pltpu.PrefetchScalarGridSpec(
                num_scalar_prefetch=0,
                grid=(ni, nk),
                in_specs=[
                    pl.BlockSpec((tm, C), lambda i, k: (i, 0)),  # resident over k
                    pl.BlockSpec((C, th), lambda i, k: (0, k)),  # Wfc k-slice
                    pl.BlockSpec((th, C), lambda i, k: (k, 0)),  # Wproj k-slice
                ],
                out_specs=pl.BlockSpec((tm, C), lambda i, k: (i, 0)),
                scratch_shapes=[pltpu.VMEM((tm, C), jnp.float32)],
            ),
            compiler_params=pltpu.CompilerParams(
                dimension_semantics=("parallel", "arbitrary"),
                vmem_limit_bytes=vmem_limit,
            ),
            cost_estimate=cost,
        )(x2d, wfc_t, wproj_t)

    return out2d.reshape(B, T, C)


def mlp_reference(x, w_fc, w_proj):
    h = jnp.einsum("btc,hc->bth", x, w_fc)
    h = jnp.square(jnp.maximum(h, 0.0))
    return jnp.einsum("bth,ch->btc", h, w_proj)


if __name__ == "__main__":
    # --- Config 1: small config consistent with the module (n_embd=32, B=2, T=8).
    B, T, C = 2, 8, 32
    H = 4 * C

    key = jax.random.PRNGKey(0)
    kx, kfc, kpr = jax.random.split(key, 3)

    x = jax.random.normal(kx, (B, T, C), dtype=jnp.float32)
    w_fc = jax.random.normal(kfc, (H, C), dtype=jnp.float32) * 0.02   # (out, in)
    w_proj = jnp.zeros((C, H), dtype=jnp.float32)                     # module zero-inits c_proj

    out = jax.block_until_ready(mlp_forward(x, w_fc, w_proj, compute_dtype=jnp.float32))
    ref = mlp_reference(x, w_fc, w_proj)
    assert out.shape == (B, T, C)
    assert jnp.allclose(out, ref, atol=1e-5, rtol=1e-5)

    # Non-zero c_proj so the second matmul path is exercised (f32, tight tol).
    w_proj_nz = jax.random.normal(kpr, (C, H), dtype=jnp.float32) * 0.02
    out_nz = jax.block_until_ready(mlp_forward(x, w_fc, w_proj_nz,
                                               compute_dtype=jnp.float32))
    ref_nz = mlp_reference(x, w_fc, w_proj_nz)
    assert jnp.allclose(out_nz, ref_nz, atol=1e-4, rtol=1e-4)

    # --- Config 2: multi-tile token grid.  Default (th=None) hits the
    # resident-weights path; explicit th=128 exercises the hidden-tiled
    # reduction path (4 k-steps: first-store / mid-accumulate / final-fused-store).
    B2, T2, C2 = 4, 64, 128
    H2 = 4 * C2
    k2x, k2f, k2p = jax.random.split(jax.random.PRNGKey(1), 3)
    x2 = jax.random.normal(k2x, (B2, T2, C2), dtype=jnp.float32)
    w_fc2 = jax.random.normal(k2f, (H2, C2), dtype=jnp.float32) * 0.02
    w_pr2 = jax.random.normal(k2p, (C2, H2), dtype=jnp.float32) * 0.02
    ref2 = mlp_reference(x2, w_fc2, w_pr2)

    out2_res = jax.block_until_ready(
        mlp_forward(x2, w_fc2, w_pr2, compute_dtype=jnp.float32))
    assert jnp.allclose(out2_res, ref2, atol=1e-4, rtol=1e-4)

    out2_tiled = jax.block_until_ready(
        mlp_forward(x2, w_fc2, w_pr2, th=128, compute_dtype=jnp.float32))
    assert jnp.allclose(out2_tiled, ref2, atol=1e-4, rtol=1e-4)

    # --- bf16-by-default path (MXU-friendly on v6e/v7x); f32 accumulation inside.
    out_bf = jax.block_until_ready(mlp_forward(x2, w_fc2, w_pr2))
    assert jnp.allclose(out_bf, ref2, atol=5e-3, rtol=5e-2)
    out_bf_tiled = jax.block_until_ready(mlp_forward(x2, w_fc2, w_pr2, th=128))
    assert jnp.allclose(out_bf_tiled, ref2, atol=5e-3, rtol=5e-2)

    # --- Config 3: H not divisible by the requested th (th=256, H=384) ->
    # divisor fallback must pick th=128 (not th=H), 3 k-steps.
    B3, T3, C3 = 2, 48, 96
    H3 = 4 * C3
    k3x, k3f, k3p = jax.random.split(jax.random.PRNGKey(2), 3)
    x3 = jax.random.normal(k3x, (B3, T3, C3), dtype=jnp.float32)
    w_fc3 = jax.random.normal(k3f, (H3, C3), dtype=jnp.float32) * 0.02
    w_pr3 = jax.random.normal(k3p, (C3, H3), dtype=jnp.float32) * 0.02
    out3 = jax.block_until_ready(
        mlp_forward(x3, w_fc3, w_pr3, th=256, compute_dtype=jnp.float32))
    ref3 = mlp_reference(x3, w_fc3, w_pr3)
    assert jnp.allclose(out3, ref3, atol=1e-4, rtol=1e-4)

    # --- pre-transposed (in, out)-layout weights (hoisted-transpose path).
    out_pt = jax.block_until_ready(
        mlp_forward(x2, w_fc2.T, w_pr2.T, compute_dtype=jnp.float32,
                    pre_transposed=True))
    assert jnp.allclose(out_pt, ref2, atol=1e-4, rtol=1e-4)

    print("KERNEL_OK")
</pallas_src>

<mosaic_0001>
module attributes {stable_mosaic.version = 11 : i64} {
  func.func @_mlp_kernel_resident(%arg0: i32, %arg1: memref<8x32xf32, #tpu.memory_space<vmem>>, %arg2: memref<32x128xf32, #tpu.memory_space<vmem>>, %arg3: memref<128x32xf32, #tpu.memory_space<vmem>>, %arg4: memref<8x32xf32, #tpu.memory_space<vmem>>) attributes {dimension_semantics = [#tpu.dimension_semantics<parallel>], iteration_bounds = array<i64: 2>, scalar_prefetch = 0 : i64, scratch_operands = 0 : i64, tpu.core_type = #tpu.core_type<tc>, window_params = [{transform_indices = @transform_0, window_bounds = array<i64: 8, 32>}, {pipeline_mode = #tpu.pipeline_mode<synchronous>, transform_indices = @transform_1, window_bounds = array<i64: 32, 128>}, {pipeline_mode = #tpu.pipeline_mode<synchronous>, transform_indices = @transform_2, window_bounds = array<i64: 128, 32>}, {transform_indices = @transform_3, window_bounds = array<i64: 8, 32>}]} {
    %c0 = arith.constant 0 : index
    %c0_0 = arith.constant 0 : index
    %0 = vector.load %arg1[%c0, %c0_0] : memref<8x32xf32, #tpu.memory_space<vmem>>, vector<8x32xf32>
    %c0_1 = arith.constant 0 : index
    %c0_2 = arith.constant 0 : index
    %1 = vector.load %arg2[%c0_1, %c0_2] : memref<32x128xf32, #tpu.memory_space<vmem>>, vector<32x128xf32>
    %cst = arith.constant dense<0.000000e+00> : vector<8x128xf32>
    %2 = tpu.matmul %0, %1, %cst {dimension_numbers = #tpu.dot_dimension_numbers<[1], [0], [0], [1], [0, 0, 1, 1], [], []>} : vector<8x32xf32>, vector<32x128xf32>, vector<8x128xf32> -> vector<8x128xf32>
    %cst_3 = arith.constant 0.000000e+00 : f32
    %3 = vector.broadcast %cst_3 : f32 to vector<8x128xf32>
    %4 = arith.maximumf %2, %3 : vector<8x128xf32>
    %5 = arith.mulf %4, %4 : vector<8x128xf32>
    %c0_4 = arith.constant 0 : index
    %c0_5 = arith.constant 0 : index
    %6 = vector.load %arg3[%c0_4, %c0_5] : memref<128x32xf32, #tpu.memory_space<vmem>>, vector<128x32xf32>
    %cst_6 = arith.constant dense<0.000000e+00> : vector<8x32xf32>
    %7 = tpu.matmul %5, %6, %cst_6 {dimension_numbers = #tpu.dot_dimension_numbers<[1], [0], [0], [1], [0, 0, 1, 1], [], []>} : vector<8x128xf32>, vector<128x32xf32>, vector<8x32xf32> -> vector<8x32xf32>
    %c0_7 = arith.constant 0 : index
    %c0_8 = arith.constant 0 : index
    %8 = vector.load %arg4[%c0_7, %c0_8] : memref<8x32xf32, #tpu.memory_space<vmem>>, vector<8x32xf32>
    tpu.vector_store %arg4[%c0_7, %c0_8], %7 {strides = array<i32>} : memref<8x32xf32, #tpu.memory_space<vmem>>, vector<8x32xf32>,
    return
  }
  func.func @transform_0(%arg0: i32) -> (i32, i32) {
    %c0_i32 = arith.constant 0 : i32
    %c0_i32_0 = arith.constant 0 : i32
    return %arg0, %c0_i32 : i32, i32
  }
  func.func @transform_1(%arg0: i32) -> (i32, i32) {
    %c0_i32 = arith.constant 0 : i32
    %c0_i32_0 = arith.constant 0 : i32
    %c0_i32_1 = arith.constant 0 : i32
    return %c0_i32, %c0_i32_0 : i32, i32
  }
  func.func @transform_2(%arg0: i32) -> (i32, i32) {
    %c0_i32 = arith.constant 0 : i32
    %c0_i32_0 = arith.constant 0 : i32
    %c0_i32_1 = arith.constant 0 : i32
    return %c0_i32, %c0_i32_0 : i32, i32
  }
  func.func @transform_3(%arg0: i32) -> (i32, i32) {
    %c0_i32 = arith.constant 0 : i32
    %c0_i32_0 = arith.constant 0 : i32
    return %arg0, %c0_i32 : i32, i32
  }
}

</mosaic_0001>

<llo_original>
// kernel: tpu_custom_call.1
$region0: #{tpu_custom_call.1}
  #allocation0 [shape = 'u32[]', space=smem, size = 0x4, offset = 0x4, fixed_abs, tag = 'smem constant byte address 0x4 - core index']
  #allocation1 [shape = 'u32[144,128]{1,0:T(1,128)}', space=vmem, size = 0x12000, scoped, tag = 'internal scratch']
  %s0 = inlined_call_operand.vmem [shape: f32[16,32], index: 0, kind: input, shape index: {}]
  %s1 = inlined_call_operand.vmem [shape: f32[32,128], index: 1, kind: input, shape index: {}]
  %s2 = inlined_call_operand.vmem [shape: f32[128,32], index: 2, kind: input, shape index: {}]
  %s3 = inlined_call_operand.hbm [shape: f32[16,32], index: 3, kind: output, shape index: {}]
  %s4 = sld [smem:[#allocation0]]
  $region45: #{tpu_custom_call.1} parent=0
    _
  %s6 = ssub.s32 1, %s4
  %s7 = scalar_select 0, %s6, %s4
  $region1: #{tpu_custom_call.1} parent=0
    #allocation2 [shape = 'u8[8192]{0}', space=vmem, size = 0x2000, scoped, tag = 'output window, operand 0']
    #allocation3 [shape = 's32[2]{0}', space=sflag, size = 0x8, scoped, tag = 'scoped memory for tpu_custom_call.1']
    %8 = vsyncpa [#allocation3], 0
    %s9 = scalar_lea.sflag [#allocation3], 1
    %10 = vsyncpa %s9, 0
    loop: start=0, step=1, limit=4
    $region2: #{tpu_custom_call.1} parent=1 // loop_pre_header
      _
    $region3: #{tpu_custom_call.1} parent=1 // loop_header
      %s12 = sphi 0, %s16
      %p13 = scmp.ge.s32.totalorder %s12, 4
      %s22 = sphi 0, %s24
      %s25 = sphi 0, %s22
      %s26 = sphi 0, %s25
      %s42 = sphi 0, %s26
      %s46 = sphi 0, %s46
      %s48 = sphi 0, %s46
      %s49 = sphi 0, %s48
      %s63 = sphi 0, %s49
      %s67 = sphi 0, %s67
      %s69 = sphi 0, %s67
      %s70 = sphi 0, %s69
      %s84 = sphi 0, %s70
      %s90 = sphi 0, %s92
      %s93 = sphi 0, %s90
      %s94 = sphi 0, %s93
      %s110 = sphi 0, %s94
    $region4: #{tpu_custom_call.1} parent=1 // loop_header_branch
      %15 = sbr.rel (%p13) target = $region8
    $region5: #{tpu_custom_call.1} parent=1 // loop_body
      %s17 = ssub.s32 %s12, 1
      %s18 = ssub.s32 %s12, 2
      %s19 = sadd.s32 %s12, 1
      %s20 = ssub.s32 %s12, %s19
      %p21 = scmp.eq.s32.totalorder %s20, 0
      %s23 = sadd.s32 %s22, 1
      %s24 = scalar_select %p21, %s22, %s23
      %p27 = pneg %p21
      %p28 = scmp.eq.s32.totalorder %s12, 1
      %p29 = por %p27, %p28
      %p30 = scmp.ne.s32.totalorder %s22, %s25
      %p31 = scmp.eq.s32.totalorder %s12, 0
      %p32 = por %p30, %p31
      %p33 = scmp.ne.s32.totalorder %s22, %s25
      %p34 = scmp.eq.s32.totalorder %s17, 1
      %p35 = por %p33, %p34
      %p36 = scmp.ne.s32.totalorder %s25, %s26
      %p37 = scmp.eq.s32.totalorder %s17, 0
      %p38 = por %p36, %p37
      %p39 = scmp.ne.s32.totalorder %s25, %s26
      %p40 = scmp.eq.s32.totalorder %s18, 1
      %p41 = por %p39, %p40
      %p43 = scmp.ne.s32.totalorder %s26, %s42
      %p44 = scmp.eq.s32.totalorder %s18, 0
      %p45 = por %p43, %p44
      %s47 = sadd.s32 %s46, 1
      %p50 = scmp.eq.s32.totalorder %s12, 1
      %p51 = scmp.ne.s32.totalorder %s46, %s48
      %p52 = scmp.eq.s32.totalorder %s12, 0
      %p53 = por %p51, %p52
      %p54 = scmp.ne.s32.totalorder %s46, %s48
      %p55 = scmp.eq.s32.totalorder %s17, 1
      %p56 = por %p54, %p55
      %p57 = scmp.ne.s32.totalorder %s48, %s49
      %p58 = scmp.eq.s32.totalorder %s17, 0
      %p59 = por %p57, %p58
      %p60 = scmp.ne.s32.totalorder %s48, %s49
      %p61 = scmp.eq.s32.totalorder %s18, 1
      %p62 = por %p60, %p61
      %p64 = scmp.ne.s32.totalorder %s49, %s63
      %p65 = scmp.eq.s32.totalorder %s18, 0
      %p66 = por %p64, %p65
      %s68 = sadd.s32 %s67, 1
      %p71 = scmp.eq.s32.totalorder %s12, 1
      %p72 = scmp.ne.s32.totalorder %s67, %s69
      %p73 = scmp.eq.s32.totalorder %s12, 0
      %p74 = por %p72, %p73
      %p75 = scmp.ne.s32.totalorder %s67, %s69
      %p76 = scmp.eq.s32.totalorder %s17, 1
      %p77 = por %p75, %p76
      %p78 = scmp.ne.s32.totalorder %s69, %s70
      %p79 = scmp.eq.s32.totalorder %s17, 0
      %p80 = por %p78, %p79
      %p81 = scmp.ne.s32.totalorder %s69, %s70
      %p82 = scmp.eq.s32.totalorder %s18, 1
      %p83 = por %p81, %p82
      %p85 = scmp.ne.s32.totalorder %s70, %s84
      %p86 = scmp.eq.s32.totalorder %s18, 0
      %p87 = por %p85, %p86
      %s88 = ssub.s32 %s12, %s19
      %p89 = scmp.eq.s32.totalorder %s88, 0
      %s91 = sadd.s32 %s90, 1
      %s92 = scalar_select %p89, %s90, %s91
      %p95 = pneg %p89
      %p96 = scmp.eq.s32.totalorder %s12, 1
      %p97 = por %p95, %p96
      %p98 = scmp.ne.s32.totalorder %s90, %s93
      %p99 = scmp.eq.s32.totalorder %s12, 0
      %p100 = por %p98, %p99
      %p101 = scmp.ne.s32.totalorder %s90, %s93
      %p102 = scmp.eq.s32.totalorder %s17, 1
      %p103 = por %p101, %p102
      %p104 = scmp.ne.s32.totalorder %s93, %s94
      %p105 = scmp.eq.s32.totalorder %s17, 0
      %p106 = por %p104, %p105
      %p107 = scmp.ne.s32.totalorder %s93, %s94
      %p108 = scmp.eq.s32.totalorder %s18, 1
      %p109 = por %p107, %p108
      %p111 = scmp.ne.s32.totalorder %s94, %s110
      %p112 = scmp.eq.s32.totalorder %s18, 0
      %p113 = por %p111, %p112
      %p114 = scmp.le.s32.totalorder 1, %s12
      %p115 = scmp.lt.s32.totalorder %s12, 3
      %p116 = pnand %p114, %p115
      %p117 = pneg %p116
      // Predicated region
      $region9: #{tpu_custom_call.1} parent=5 // pred_check
        _
      $region10: #{tpu_custom_call.1} parent=5 // pred_check_branch
        %119 = sbr.rel (%p116) target = $region12
      $region11: #{tpu_custom_call.1} parent=5 // pred_region
        %s120 = ssub.s32 %s12, 1
        // Predicated region
        $region13: #{tpu_custom_call.1} parent=11 // pred_check
          %p121 = pneg %p59
        $region14: #{tpu_custom_call.1} parent=11 // pred_check_branch
          %123 = sbr.rel (%p121) target = $region16
        $region15: #{tpu_custom_call.1} parent=11 // pred_region
          _
        $region16: #{tpu_custom_call.1} parent=11 // pred_fallthru
          _
        // Predicated region
        $region17: #{tpu_custom_call.1} parent=11 // pred_check
          %p124 = pneg %p80
        $region18: #{tpu_custom_call.1} parent=11 // pred_check_branch
          %126 = sbr.rel (%p124) target = $region20
        $region19: #{tpu_custom_call.1} parent=11 // pred_region
          _
        $region20: #{tpu_custom_call.1} parent=11 // pred_fallthru
          _
      $region12: #{tpu_custom_call.1} parent=5 // pred_fallthru
        _
      %p127 = scmp.lt.s32.totalorder %s12, 2
      // Predicated region
      $region21: #{tpu_custom_call.1} parent=5 // pred_check
        %p128 = pneg %p127
      $region22: #{tpu_custom_call.1} parent=5 // pred_check_branch
        %130 = sbr.rel (%p128) target = $region24
      $region23: #{tpu_custom_call.1} parent=5 // pred_region
        // Predicated region
        $region25: #{tpu_custom_call.1} parent=23 // pred_check
          %p131 = pneg %p32
        $region26: #{tpu_custom_call.1} parent=23 // pred_check_branch
          %133 = sbr.rel (%p131) target = $region28
        $region27: #{tpu_custom_call.1} parent=23 // pred_region
          %p134 = scmp.lt.s32.totalorder %s12, 1
          %s135 = scalar_select %p134, %s12, 1
          %s136 = smul.addr %s135, 8
          %s137 = scalar_lea.vmem %s0, %s136
        $region28: #{tpu_custom_call.1} parent=23 // pred_fallthru
          _
      $region24: #{tpu_custom_call.1} parent=5 // pred_fallthru
        _
      %p138 = scmp.le.s32.totalorder 1, %s12
      %p139 = scmp.lt.s32.totalorder %s12, 3
      %p140 = pnand %p138, %p139
      %p141 = pneg %p140
      // Predicated region
      $region29: #{tpu_custom_call.1} parent=5 // pred_check
        _
      $region30: #{tpu_custom_call.1} parent=5 // pred_check_branch
        %143 = sbr.rel (%p140) target = $region32
      $region31: #{tpu_custom_call.1} parent=5 // pred_region
        %s144 = ssub.s32 %s12, 1
        %p145 = scmp.lt.s32.totalorder %s17, 1
        %s146 = scalar_select %p145, %s17, 1
        %s147 = smul.addr %s146, 8
        %s148 = scalar_lea.vmem %s0, %s147
        %p149 = pneg %p38
        %p150 = pneg %p35
        %p151 = pneg %p59
        %p152 = pneg %p56
        %p153 = pneg %p80
        %p154 = pneg %p77
        %p155 = pneg %p106
        %p156 = pneg %p103
        %s157 = sand.u32 %s93, 1
        %s158 = scalar_lea.sflag [#allocation3], %s157
        %s159 = sand.u32 %s93, 1
        %s160 = smul.addr %s159, 8
        %s161 = scalar_lea.vmem [#allocation2], %s160
        %p162 = scmp.lt.s32.totalorder %s17, 1
        %s163 = scalar_select %p162, %s17, 1
        %s164 = smul.addr %s163, 8
        %s165 = scalar_lea.vmem %s0, %s164
        %v166 = vld [vmem:[%s165] sm:$0xff]
        %v167 = vld [vmem:[%s1] sm:$0xff]
        %v168 = vld [vmem:[%s1 + $0x8] sm:$0xff]
        %v169 = vld [vmem:[%s1 + $0x10] sm:$0xff]
        %v170 = vld [vmem:[%s1 + $0x18] sm:$0xff]
        %vm171 = vcmask 261120
        %v173 = vsel %vm171, %v166, 0
        %175 = vmatprep.subr.mxu0 0.0
        %176 = vmatpush1.msra.mxu0 0.0
        %177 = vmatprep.subr.mxu0 0.0
        %178 = vmatpush1.msra.mxu0 0.0
        %179 = vmatprep.subr.mxu0 0.0
        %180 = vmatpush1.msra.mxu0 0.0
        %181 = vmatprep.subr.mxu0 0.0
        %182 = vmatpush1.msra.mxu0 0.0
        %183 = vmatprep.subr.mxu0 0.0
        %184 = vmatpush1.msra.mxu0 0.0
        %185 = vmatprep.subr.mxu0 0.0
        %186 = vmatpush1.msra.mxu0 0.0
        %187 = vmatprep.subr.mxu0 0.0
        %188 = vmatpush1.msra.mxu0 0.0
        %189 = vmatprep.subr.mxu0 0.0
        %190 = vmatpush1.msra.mxu0 0.0
        %191 = vmatprep.subr.mxu0 0.0
        %192 = vmatpush1.msra.mxu0 0.0
        %193 = vmatprep.subr.mxu0 0.0
        %194 = vmatpush1.msra.mxu0 0.0
        %195 = vmatprep.subr.mxu0 0.0
        %196 = vmatpush1.msra.mxu0 0.0
        %197 = vmatprep.subr.mxu0 0.0
        %198 = vmatpush1.msra.mxu0 0.0
        %199 = vmatprep.subr.mxu0 0.0
        %200 = vmatpush1.msra.mxu0 %v170
        %201 = vmatprep.subr.mxu0 0.0
        %202 = vmatpush1.msra.mxu0 %v169
        %203 = vmatprep.subr.mxu0 0.0
        %204 = vmatpush1.msra.mxu0 %v168
        %205 = vmatprep.subr.mxu0 0.0
        %206 = vmatpush1.msra.mxu0 %v167
        %207 = vmatprep.subr.mxu0 0.0
        %208 = vmatpush2.msra.mxu0 0.0
        %209 = vmatprep.subr.mxu0 0.0
        %210 = vmatpush2.msra.mxu0 0.0
        %211 = vmatprep.subr.mxu0 0.0
        %212 = vmatpush2.msra.mxu0 0.0
        %213 = vmatprep.subr.mxu0 0.0
        %214 = vmatpush2.msra.mxu0 0.0
        %215 = vmatprep.subr.mxu0 0.0
        %216 = vmatpush2.msra.mxu0 0.0
        %217 = vmatprep.subr.mxu0 0.0
        %218 = vmatpush2.msra.mxu0 0.0
        %219 = vmatprep.subr.mxu0 0.0
        %220 = vmatpush2.msra.mxu0 0.0
        %221 = vmatprep.subr.mxu0 0.0
        %222 = vmatpush2.msra.mxu0 0.0
        %223 = vmatprep.subr.mxu0 0.0
        %224 = vmatpush2.msra.mxu0 0.0
        %225 = vmatprep.subr.mxu0 0.0
        %226 = vmatpush2.msra.mxu0 0.0
        %227 = vmatprep.subr.mxu0 0.0
        %228 = vmatpush2.msra.mxu0 0.0
        %229 = vmatprep.subr.mxu0 0.0
        %230 = vmatpush2.msra.mxu0 0.0
        %231 = vmatprep.subr.mxu0 0.0
        %232 = vmatpush2.msra.mxu0 0.0
        %233 = vmatprep.subr.mxu0 0.0
        %234 = vmatpush2.msra.mxu0 0.0
        %235 = vmatprep.subr.mxu0 0.0
        %236 = vmatpush2.msra.mxu0 0.0
        %237 = vmatprep.subr.mxu0 0.0
        %238 = vmatpush2.msra.mxu0 0.0
        %239 = vmatprep.mubr.f32.mxu0 0.0
        %240 = vmatmul.mubr.f32.gmra.mxu0 %v173
        %v241 = vpop.f32.mrf.mxu0
        %v242 = vadd.f32 0.0, %v241
        %v243 = vpop.f32.mrf.mxu0
        %244 = vdwg.mxu0
        %v245 = vmax.f32 %v242, 0.0
        %v246 = vmul.f32 %v245, %v245
        %v247 = vld [vmem:[%s2] sm:$0xff]
        %v248 = vld [vmem:[%s2 + $0x8] sm:$0xff]
        %v249 = vld [vmem:[%s2 + $0x10] sm:$0xff]
        %v250 = vld [vmem:[%s2 + $0x18] sm:$0xff]
        %v251 = vld [vmem:[%s2 + $0x20] sm:$0xff]
        %v252 = vld [vmem:[%s2 + $0x28] sm:$0xff]
        %v253 = vld [vmem:[%s2 + $0x30] sm:$0xff]
        %v254 = vld [vmem:[%s2 + $0x38] sm:$0xff]
        %v255 = vld [vmem:[%s2 + $0x40] sm:$0xff]
        %v256 = vld [vmem:[%s2 + $0x48] sm:$0xff]
        %v257 = vld [vmem:[%s2 + $0x50] sm:$0xff]
        %v258 = vld [vmem:[%s2 + $0x58] sm:$0xff]
        %v259 = vld [vmem:[%s2 + $0x60] sm:$0xff]
        %v260 = vld [vmem:[%s2 + $0x68] sm:$0xff]
        %v261 = vld [vmem:[%s2 + $0x70] sm:$0xff]
        %v262 = vld [vmem:[%s2 + $0x78] sm:$0xff]
        %263 = vmatprep.subr.mxu0 0.0
        %264 = vmatpush1.msra.mxu0 %v262
        %265 = vmatprep.subr.mxu0 0.0
        %266 = vmatpush1.msra.mxu0 %v261
        %267 = vmatprep.subr.mxu0 0.0
        %268 = vmatpush1.msra.mxu0 %v260
        %269 = vmatprep.subr.mxu0 0.0
        %270 = vmatpush1.msra.mxu0 %v259
        %271 = vmatprep.subr.mxu0 0.0
        %272 = vmatpush1.msra.mxu0 %v258
        %273 = vmatprep.subr.mxu0 0.0
        %274 = vmatpush1.msra.mxu0 %v257
        %275 = vmatprep.subr.mxu0 0.0
        %276 = vmatpush1.msra.mxu0 %v256
        %277 = vmatprep.subr.mxu0 0.0
        %278 = vmatpush1.msra.mxu0 %v255
        %279 = vmatprep.subr.mxu0 0.0
        %280 = vmatpush1.msra.mxu0 %v254
        %281 = vmatprep.subr.mxu0 0.0
        %282 = vmatpush1.msra.mxu0 %v253
        %283 = vmatprep.subr.mxu0 0.0
        %284 = vmatpush1.msra.mxu0 %v252
        %285 = vmatprep.subr.mxu0 0.0
        %286 = vmatpush1.msra.mxu0 %v251
        %287 = vmatprep.subr.mxu0 0.0
        %288 = vmatpush1.msra.mxu0 %v250
        %289 = vmatprep.subr.mxu0 0.0
        %290 = vmatpush1.msra.mxu0 %v249
        %291 = vmatprep.subr.mxu0 0.0
        %292 = vmatpush1.msra.mxu0 %v248
        %293 = vmatprep.subr.mxu0 0.0
        %294 = vmatpush1.msra.mxu0 %v247
        %295 = vmatprep.subr.mxu0 0.0
        %296 = vmatpush2.msra.mxu0 0.0
        %297 = vmatprep.subr.mxu0 0.0
        %298 = vmatpush2.msra.mxu0 0.0
        %299 = vmatprep.subr.mxu0 0.0
        %300 = vmatpush2.msra.mxu0 0.0
        %301 = vmatprep.subr.mxu0 0.0
        %302 = vmatpush2.msra.mxu0 0.0
        %303 = vmatprep.subr.mxu0 0.0
        %304 = vmatpush2.msra.mxu0 0.0
        %305 = vmatprep.subr.mxu0 0.0
        %306 = vmatpush2.msra.mxu0 0.0
        %307 = vmatprep.subr.mxu0 0.0
        %308 = vmatpush2.msra.mxu0 0.0
        %309 = vmatprep.subr.mxu0 0.0
        %310 = vmatpush2.msra.mxu0 0.0
        %311 = vmatprep.subr.mxu0 0.0
        %312 = vmatpush2.msra.mxu0 0.0
        %313 = vmatprep.subr.mxu0 0.0
        %314 = vmatpush2.msra.mxu0 0.0
        %315 = vmatprep.subr.mxu0 0.0
        %316 = vmatpush2.msra.mxu0 0.0
        %317 = vmatprep.subr.mxu0 0.0
        %318 = vmatpush2.msra.mxu0 0.0
        %319 = vmatprep.subr.mxu0 0.0
        %320 = vmatpush2.msra.mxu0 0.0
        %321 = vmatprep.subr.mxu0 0.0
        %322 = vmatpush2.msra.mxu0 0.0
        %323 = vmatprep.subr.mxu0 0.0
        %324 = vmatpush2.msra.mxu0 0.0
        %325 = vmatprep.subr.mxu0 0.0
        %326 = vmatpush2.msra.mxu0 0.0
        %327 = vmatprep.mubr.f32.mxu0 0.0
        %328 = vmatmul.mubr.f32.gmra.mxu0 %v246
        %v329 = vpop.f32.mrf.mxu0
        %v330 = vadd.f32 0.0, %v329
        %v331 = vpop.f32.mrf.mxu0
        %332 = vdwg.mxu0
        %333 = vst.msk [vmem:[%s161] sm:$0xff] %vm171, %v330
        %s334 = sand.u32 %s93, 1
        %s335 = scalar_lea.sflag [#allocation3], %s334
        %s336 = sand.u32 %s93, 1
        %s337 = smul.addr %s336, 8
        %s338 = scalar_lea.vmem [#allocation2], %s337
        // Predicated region
        $region33: #{tpu_custom_call.1} parent=31 // pred_check
          %p339 = pneg %p103
        $region34: #{tpu_custom_call.1} parent=31 // pred_check_branch
          %341 = sbr.rel (%p339) target = $region36
        $region35: #{tpu_custom_call.1} parent=31 // pred_region
          %s343 = ssub.s32 128, 128
          %344 = vsyncadd %s335, %s343
          %s345 = smul.addr %s17, 128
          %s346 = scalar_lea.hbm %s3, %s345
          %s348 = sshll.u32 %s338, 4
          %s349 = int_to_ptr.vmem [resolvable:$true] %s348
          %351 = dma.vmem_to_hbm [thread:$0]  %s349, 128, %s346, %s335
        $region36: #{tpu_custom_call.1} parent=31 // pred_fallthru
          _
      $region32: #{tpu_custom_call.1} parent=5 // pred_fallthru
        _
      %p352 = scmp.le.s32.totalorder 2, %s12
      // Predicated region
      $region37: #{tpu_custom_call.1} parent=5 // pred_check
        %p353 = pneg %p352
      $region38: #{tpu_custom_call.1} parent=5 // pred_check_branch
        %355 = sbr.rel (%p353) target = $region40
      $region39: #{tpu_custom_call.1} parent=5 // pred_region
        %s356 = ssub.s32 %s12, 2
        // Predicated region
        $region41: #{tpu_custom_call.1} parent=39 // pred_check
          %p357 = pneg %p109
        $region42: #{tpu_custom_call.1} parent=39 // pred_check_branch
          %359 = sbr.rel (%p357) target = $region44
        $region43: #{tpu_custom_call.1} parent=39 // pred_region
          %s360 = sand.u32 %s94, 1
          %s361 = scalar_lea.sflag [#allocation3], %s360
          %s362 = sand.u32 %s94, 1
          %s363 = smul.addr %s362, 8
          %s364 = scalar_lea.vmem [#allocation2], %s363
          %365 = dma.done %s361, 128
        $region44: #{tpu_custom_call.1} parent=39 // pred_fallthru
          _
      $region40: #{tpu_custom_call.1} parent=5 // pred_fallthru
        _
    $region6: #{tpu_custom_call.1} parent=1 // loop_footer
      %s16 = sadd.s32 1, %s12
    $region7: #{tpu_custom_call.1} parent=1 // loop_footer_branch
      %11 = sbr.rel target = $region3
    $region8: #{tpu_custom_call.1} parent=1 // loop_exit
      _
    %366 = vsyncpa [#allocation3], 1
    %s367 = scalar_lea.sflag [#allocation3], 1
    %368 = vsyncpa %s367, 1

</llo_original>
